<compile_context>
chip_gen: v5e
topology: v5e:2x2
jax: 0.10.0
libtpu: 0.0.40
codegen_flags: <defaults>
</compile_context>

<pallas_src>
import jax
import jax.numpy as jnp
from jax import lax
from jax.experimental import pallas as pl
from jax.experimental.pallas import tpu as pltpu

EPS = 1e-5
LANE = 128
TM_CAP = 512   # row-tile cap: 2x-buffered (TM x 9C) bf16 patch tiles + resident weights stay
               # comfortably under the ~32 MiB scoped-VMEM default even on v7x (64 MiB VMEM).


def _round_up(x, m):
    return (x + m - 1) // m * m


def _pick_tm(m_rows):
    if m_rows >= TM_CAP:
        return TM_CAP
    return _round_up(max(m_rows, 16), 16)   # multiple of 16 (bf16 sublane packing)


# ---------------------------------------------------------------------------
# Pallas kernels
# ---------------------------------------------------------------------------
def conv_bn_relu_kernel(p_ref, w_ref, sc_ref, sh_ref, o_ref):
    """out = relu( (patches @ W) * scale + shift )   (conv bias folded into shift)."""
    z = jnp.dot(p_ref[...], w_ref[...], preferred_element_type=jnp.float32)
    z = z * sc_ref[...] + sh_ref[...]
    o_ref[...] = jnp.maximum(z, 0.0).astype(o_ref.dtype)


def res_tail_proj_kernel(p2_ref, w2_ref, sc2_ref, sh2_ref,
                         xs_ref, ws_ref, scs_ref, shs_ref, o_ref):
    """out = relu( BN2(patches2 @ W2) + BNs(x_strided @ Ws) )  -- projection shortcut."""
    main = jnp.dot(p2_ref[...], w2_ref[...], preferred_element_type=jnp.float32)
    main = main * sc2_ref[...] + sh2_ref[...]
    short = jnp.dot(xs_ref[...], ws_ref[...], preferred_element_type=jnp.float32)
    short = short * scs_ref[...] + shs_ref[...]
    o_ref[...] = jnp.maximum(main + short, 0.0).astype(o_ref.dtype)


def res_tail_id_kernel(p2_ref, w2_ref, sc2_ref, sh2_ref, xs_ref, o_ref):
    """out = relu( BN2(patches2 @ W2) + x )  -- identity shortcut (no eye matmul)."""
    main = jnp.dot(p2_ref[...], w2_ref[...], preferred_element_type=jnp.float32)
    main = main * sc2_ref[...] + sh2_ref[...]
    o_ref[...] = jnp.maximum(main + xs_ref[...].astype(jnp.float32), 0.0).astype(o_ref.dtype)


# ---------------------------------------------------------------------------
# Glue (plain JAX): im2col, parameter folding, padding helpers
# ---------------------------------------------------------------------------
def im2col(x_nhwc, kh, kw, stride, pad):
    N, H, W, C = x_nhwc.shape
    xp = jnp.pad(x_nhwc, ((0, 0), (pad, pad), (pad, pad), (0, 0)))
    OH = (H + 2 * pad - kh) // stride + 1
    OW = (W + 2 * pad - kw) // stride + 1
    cols = []
    for i in range(kh):
        for j in range(kw):
            cols.append(xp[:, i:i + stride * OH:stride, j:j + stride * OW:stride, :])
    patches = jnp.concatenate(cols, axis=-1)               # (N, OH, OW, kh*kw*C)
    return patches.reshape(N * OH * OW, kh * kw * C), OH, OW


def fold_bn(gamma, beta, mean, var, bias=None):
    scale = gamma / jnp.sqrt(var + EPS)
    shift = beta - mean * scale
    if bias is not None:
        shift = shift + bias * scale        # conv bias folded into BN shift
    return scale, shift


def conv_w_to_mat(w_oihw):
    # (Cout, Cin, KH, KW) -> (KH*KW*Cin, Cout), matching im2col column ordering
    Cout, Cin, KH, KW = w_oihw.shape
    return jnp.transpose(w_oihw, (2, 3, 1, 0)).reshape(KH * KW * Cin, Cout)


def _pad_cols(m, n_to):
    return jnp.pad(m, ((0, 0), (0, n_to - m.shape[1])))


def _pad_row_vec(v, n_to):
    return jnp.pad(v, (0, n_to - v.shape[0]))[None, :]      # (1, n_to)


def _bcast_spec(np_):
    return pl.BlockSpec((1, np_), lambda i: (0, 0))          # resident broadcast row


# ---------------------------------------------------------------------------
# Tiled pallas_call wrappers
# ---------------------------------------------------------------------------
def _conv_bn_relu_call(patches, w_mat, scale, shift, out_dtype):
    M, K = patches.shape
    Np = w_mat.shape[1]
    TM = _pick_tm(M)
    Mp = _round_up(M, TM)
    patches = jnp.pad(patches, ((0, Mp - M), (0, 0)))
    out = pl.pallas_call(
        conv_bn_relu_kernel,
        out_shape=jax.ShapeDtypeStruct((Mp, Np), out_dtype),
        grid=(Mp // TM,),
        in_specs=[
            pl.BlockSpec((TM, K), lambda i: (i, 0)),         # streamed patch tiles
            pl.BlockSpec((K, Np), lambda i: (0, 0)),         # resident weights
            _bcast_spec(Np),                                  # resident BN scale
            _bcast_spec(Np),                                  # resident BN shift(+bias)
        ],
        out_specs=pl.BlockSpec((TM, Np), lambda i: (i, 0)),
        compiler_params=pltpu.CompilerParams(dimension_semantics=("parallel",)),
    )(patches, w_mat, scale, shift)
    return out[:M]


def resblock_forward(x_nchw, p, stride):
    N, Cin, H, W = x_nchw.shape
    Cout = p["w1"].shape[0]
    Np = _round_up(Cout, LANE)                               # lane-dense output width

    x = jnp.transpose(x_nchw, (0, 2, 3, 1))                  # NHWC, f32
    x_bf = x.astype(jnp.bfloat16)                            # bf16 MXU operands

    # ---- conv1 (3x3, stride, pad=1) + BN1 + ReLU ----
    p1, OH, OW = im2col(x_bf, 3, 3, stride, 1)
    w1m = _pad_cols(conv_w_to_mat(p["w1"]), Np).astype(jnp.bfloat16)
    sc1, sh1 = fold_bn(p["g1"], p["be1"], p["m1"], p["v1"], p["b1"])
    y1 = _conv_bn_relu_call(p1, w1m, _pad_row_vec(sc1, Np), _pad_row_vec(sh1, Np),
                            jnp.bfloat16)                    # bf16 store: halves HBM traffic
    y1 = y1[:, :Cout].reshape(N, OH, OW, Cout)

    # ---- conv2 (3x3, stride 1, pad=1) + BN2, shortcut, add, ReLU ----
    p2, OH2, OW2 = im2col(y1, 3, 3, 1, 1)
    w2m = _pad_cols(conv_w_to_mat(p["w2"]), Np).astype(jnp.bfloat16)
    sc2, sh2 = fold_bn(p["g2"], p["be2"], p["m2"], p["v2"], p["b2"])
    sc2 = _pad_row_vec(sc2, Np)
    sh2 = _pad_row_vec(sh2, Np)

    M = p2.shape[0]
    K2 = p2.shape[1]
    TM = _pick_tm(M)
    Mp = _round_up(M, TM)
    p2 = jnp.pad(p2, ((0, Mp - M), (0, 0)))
    grid = (Mp // TM,)
    cparams = pltpu.CompilerParams(dimension_semantics=("parallel",))

    if stride != 1 or Cin != Cout:
        # projection shortcut: strided 1x1 conv (matmul) + BN, fused into the tail kernel
        xs = x_bf[:, ::stride, ::stride, :].reshape(N * OH * OW, Cin)
        xs = jnp.pad(xs, ((0, Mp - M), (0, 0)))
        wsm = _pad_cols(p["ws"].reshape(Cout, Cin).T, Np).astype(jnp.bfloat16)
        scs, shs = fold_bn(p["gs"], p["bes"], p["ms"], p["vs"], None)
        out = pl.pallas_call(
            res_tail_proj_kernel,
            out_shape=jax.ShapeDtypeStruct((Mp, Np), jnp.float32),
            grid=grid,
            in_specs=[
                pl.BlockSpec((TM, K2), lambda i: (i, 0)),    # streamed conv2 patches
                pl.BlockSpec((K2, Np), lambda i: (0, 0)),    # resident conv2 weights
                _bcast_spec(Np), _bcast_spec(Np),
                pl.BlockSpec((TM, Cin), lambda i: (i, 0)),   # streamed shortcut input
                pl.BlockSpec((Cin, Np), lambda i: (0, 0)),   # resident 1x1 weights
                _bcast_spec(Np), _bcast_spec(Np),
            ],
            out_specs=pl.BlockSpec((TM, Np), lambda i: (i, 0)),
            compiler_params=cparams,
        )(p2, w2m, sc2, sh2, xs, wsm,
          _pad_row_vec(scs, Np), _pad_row_vec(shs, Np))
    else:
        # identity shortcut: plain f32 add, no matmul, no eye weight
        xs = x.reshape(N * H * W, Cin)
        xs = jnp.pad(xs, ((0, Mp - M), (0, Np - Cout)))
        out = pl.pallas_call(
            res_tail_id_kernel,
            out_shape=jax.ShapeDtypeStruct((Mp, Np), jnp.float32),
            grid=grid,
            in_specs=[
                pl.BlockSpec((TM, K2), lambda i: (i, 0)),
                pl.BlockSpec((K2, Np), lambda i: (0, 0)),
                _bcast_spec(Np), _bcast_spec(Np),
                pl.BlockSpec((TM, Np), lambda i: (i, 0)),    # streamed residual (f32, exact)
            ],
            out_specs=pl.BlockSpec((TM, Np), lambda i: (i, 0)),
            compiler_params=cparams,
        )(p2, w2m, sc2, sh2, xs)

    out = out[:M, :Cout].reshape(N, OH2, OW2, Cout)
    return jnp.transpose(out, (0, 3, 1, 2))                  # back to NCHW


# ---------------------------------------------------------------------------
# Pure-JAX references (PyTorch eval-mode semantics) for verification
# ---------------------------------------------------------------------------
def _conv(x, w, b, stride, pad):
    y = lax.conv_general_dilated(x, w, (stride, stride), ((pad, pad), (pad, pad)),
                                 dimension_numbers=("NCHW", "OIHW", "NCHW"))
    if b is not None:
        y = y + b[None, :, None, None]
    return y


def _bn(x, g, b, m, v):
    return g[None, :, None, None] * (x - m[None, :, None, None]) / \
        jnp.sqrt(v[None, :, None, None] + EPS) + b[None, :, None, None]


def ref_forward(x, p, stride):
    Cin = x.shape[1]
    Cout = p["w1"].shape[0]
    out = _conv(x, p["w1"], p["b1"], stride, 1)
    out = jnp.maximum(_bn(out, p["g1"], p["be1"], p["m1"], p["v1"]), 0.0)
    out = _conv(out, p["w2"], p["b2"], 1, 1)
    out = _bn(out, p["g2"], p["be2"], p["m2"], p["v2"])
    if stride != 1 or Cin != Cout:
        sc = _conv(x, p["ws"], None, stride, 0)
        sc = _bn(sc, p["gs"], p["bes"], p["ms"], p["vs"])
    else:
        sc = x
    return jnp.maximum(out + sc, 0.0)


def _q(a):  # simulate the kernel's bf16 operand quantization (f32 accumulation)
    return a.astype(jnp.bfloat16).astype(jnp.float32)


def ref_forward_mixed(x, p, stride):
    Cin = x.shape[1]
    Cout = p["w1"].shape[0]
    out = _conv(_q(x), _q(p["w1"]), p["b1"], stride, 1)
    out = jnp.maximum(_bn(out, p["g1"], p["be1"], p["m1"], p["v1"]), 0.0)
    out = _q(out)                                            # y1 stored as bf16 by the kernel
    out = _conv(out, _q(p["w2"]), p["b2"], 1, 1)
    out = _bn(out, p["g2"], p["be2"], p["m2"], p["v2"])
    if stride != 1 or Cin != Cout:
        sc = _conv(_q(x), _q(p["ws"]), None, stride, 0)
        sc = _bn(sc, p["gs"], p["bes"], p["ms"], p["vs"])
    else:
        sc = x
    return jnp.maximum(out + sc, 0.0)


# ---------------------------------------------------------------------------
if __name__ == "__main__":
    def make_params(key, Cin, Cout, with_proj):
        ks = jax.random.split(key, 17)
        p = {
            "w1": jax.random.normal(ks[0], (Cout, Cin, 3, 3), jnp.float32) * 0.1,
            "b1": jax.random.normal(ks[1], (Cout,), jnp.float32) * 0.1,
            "g1": 1.0 + 0.1 * jax.random.normal(ks[2], (Cout,), jnp.float32),
            "be1": 0.1 * jax.random.normal(ks[3], (Cout,), jnp.float32),
            "m1": 0.1 * jax.random.normal(ks[4], (Cout,), jnp.float32),
            "v1": 1.0 + 0.1 * jax.random.uniform(ks[5], (Cout,), jnp.float32),
            "w2": jax.random.normal(ks[6], (Cout, Cout, 3, 3), jnp.float32) * 0.1,
            "b2": jax.random.normal(ks[7], (Cout,), jnp.float32) * 0.1,
            "g2": 1.0 + 0.1 * jax.random.normal(ks[8], (Cout,), jnp.float32),
            "be2": 0.1 * jax.random.normal(ks[9], (Cout,), jnp.float32),
            "m2": 0.1 * jax.random.normal(ks[10], (Cout,), jnp.float32),
            "v2": 1.0 + 0.1 * jax.random.uniform(ks[11], (Cout,), jnp.float32),
        }
        if with_proj:
            p.update({
                "ws": jax.random.normal(ks[12], (Cout, Cin, 1, 1), jnp.float32) * 0.1,
                "gs": 1.0 + 0.1 * jax.random.normal(ks[13], (Cout,), jnp.float32),
                "bes": 0.1 * jax.random.normal(ks[14], (Cout,), jnp.float32),
                "ms": 0.1 * jax.random.normal(ks[15], (Cout,), jnp.float32),
                "vs": 1.0 + 0.1 * jax.random.uniform(ks[16], (Cout,), jnp.float32),
            })
        return p

    fwd = jax.jit(resblock_forward, static_argnums=2)

    def check(x, p, stride):
        out = jax.block_until_ready(fwd(x, p, stride))
        ref_mx = ref_forward_mixed(x, p, stride)   # same precision as kernel (bf16 operands)
        ref_32 = ref_forward(x, p, stride)          # full-f32 PyTorch-semantics reference
        assert out.shape == ref_32.shape, (out.shape, ref_32.shape)
        assert jnp.allclose(out, ref_mx, rtol=2e-2, atol=2e-2), \
            f"mixed-precision ref mismatch, max err {jnp.max(jnp.abs(out - ref_mx))}"
        assert jnp.allclose(out, ref_32, rtol=5e-2, atol=5e-2), \
            f"f32 ref mismatch, max err {jnp.max(jnp.abs(out - ref_32))}"

    key = jax.random.PRNGKey(0)
    k1, k2, k3, k4 = jax.random.split(key, 4)

    # projection-shortcut block (stride=2, Cin != Cout)
    pA = make_params(k1, 4, 8, True)
    xA = jax.random.normal(k2, (2, 4, 16, 16), jnp.float32)
    check(xA, pA, 2)

    # identity-shortcut block (stride=1, Cin == Cout) -- exercises a multi-step M grid
    pB = make_params(k3, 8, 8, False)
    xB = jax.random.normal(k4, (4, 8, 16, 16), jnp.float32)
    check(xB, pB, 1)

    print("KERNEL_OK")
</pallas_src>

<mosaic_0001>
module attributes {stable_mosaic.version = 11 : i64} {
  func.func @conv_bn_relu_kernel(%arg0: i32, %arg1: memref<128x36xbf16, #tpu.memory_space<vmem>>, %arg2: memref<36x128xbf16, #tpu.memory_space<vmem>>, %arg3: memref<1x128xf32, #tpu.memory_space<vmem>>, %arg4: memref<1x128xf32, #tpu.memory_space<vmem>>, %arg5: memref<128x128xbf16, #tpu.memory_space<vmem>>) attributes {dimension_semantics = [#tpu.dimension_semantics<parallel>], iteration_bounds = array<i64: 1>, scalar_prefetch = 0 : i64, scratch_operands = 0 : i64, tpu.core_type = #tpu.core_type<tc>, window_params = [{transform_indices = @transform_0, window_bounds = array<i64: 128, 36>}, {pipeline_mode = #tpu.pipeline_mode<synchronous>, transform_indices = @transform_1, window_bounds = array<i64: 36, 128>}, {pipeline_mode = #tpu.pipeline_mode<synchronous>, transform_indices = @transform_2, window_bounds = array<i64: 1, 128>}, {pipeline_mode = #tpu.pipeline_mode<synchronous>, transform_indices = @transform_3, window_bounds = array<i64: 1, 128>}, {transform_indices = @transform_4, window_bounds = array<i64: 128, 128>}]} {
    %c0 = arith.constant 0 : index
    %c0_0 = arith.constant 0 : index
    %0 = vector.load %arg1[%c0, %c0_0] : memref<128x36xbf16, #tpu.memory_space<vmem>>, vector<128x36xbf16>
    %c0_1 = arith.constant 0 : index
    %c0_2 = arith.constant 0 : index
    %1 = vector.load %arg2[%c0_1, %c0_2] : memref<36x128xbf16, #tpu.memory_space<vmem>>, vector<36x128xbf16>
    %cst = arith.constant dense<0.000000e+00> : vector<128x128xf32>
    %2 = tpu.matmul %0, %1, %cst {dimension_numbers = #tpu.dot_dimension_numbers<[1], [0], [0], [1], [0, 0, 1, 1], [], []>} : vector<128x36xbf16>, vector<36x128xbf16>, vector<128x128xf32> -> vector<128x128xf32>
    %c0_3 = arith.constant 0 : index
    %c0_4 = arith.constant 0 : index
    %3 = vector.load %arg3[%c0_3, %c0_4] : memref<1x128xf32, #tpu.memory_space<vmem>>, vector<1x128xf32>
    %4 = vector.broadcast %3 : vector<1x128xf32> to vector<128x128xf32>
    %5 = arith.mulf %2, %4 : vector<128x128xf32>
    %c0_5 = arith.constant 0 : index
    %c0_6 = arith.constant 0 : index
    %6 = vector.load %arg4[%c0_5, %c0_6] : memref<1x128xf32, #tpu.memory_space<vmem>>, vector<1x128xf32>
    %7 = vector.broadcast %6 : vector<1x128xf32> to vector<128x128xf32>
    %8 = arith.addf %5, %7 : vector<128x128xf32>
    %cst_7 = arith.constant 0.000000e+00 : f32
    %9 = vector.broadcast %cst_7 : f32 to vector<128x128xf32>
    %10 = arith.maximumf %8, %9 : vector<128x128xf32>
    %11 = arith.truncf %10 : vector<128x128xf32> to vector<128x128xbf16>
    %c0_8 = arith.constant 0 : index
    %c0_9 = arith.constant 0 : index
    %12 = vector.load %arg5[%c0_8, %c0_9] : memref<128x128xbf16, #tpu.memory_space<vmem>>, vector<128x128xbf16>
    tpu.vector_store %arg5[%c0_8, %c0_9], %11 {strides = array<i32>} : memref<128x128xbf16, #tpu.memory_space<vmem>>, vector<128x128xbf16>,
    return
  }
  func.func @transform_0(%arg0: i32) -> (i32, i32) {
    %c0_i32 = arith.constant 0 : i32
    %c0_i32_0 = arith.constant 0 : i32
    return %arg0, %c0_i32 : i32, i32
  }
  func.func @transform_1(%arg0: i32) -> (i32, i32) {
    %c0_i32 = arith.constant 0 : i32
    %c0_i32_0 = arith.constant 0 : i32
    %c0_i32_1 = arith.constant 0 : i32
    return %c0_i32, %c0_i32_0 : i32, i32
  }
  func.func @transform_2(%arg0: i32) -> (i32, i32) {
    %c0_i32 = arith.constant 0 : i32
    %c0_i32_0 = arith.constant 0 : i32
    %c0_i32_1 = arith.constant 0 : i32
    return %c0_i32, %c0_i32_0 : i32, i32
  }
  func.func @transform_3(%arg0: i32) -> (i32, i32) {
    %c0_i32 = arith.constant 0 : i32
    %c0_i32_0 = arith.constant 0 : i32
    %c0_i32_1 = arith.constant 0 : i32
    return %c0_i32, %c0_i32_0 : i32, i32
  }
  func.func @transform_4(%arg0: i32) -> (i32, i32) {
    %c0_i32 = arith.constant 0 : i32
    %c0_i32_0 = arith.constant 0 : i32
    return %arg0, %c0_i32 : i32, i32
  }
}

module attributes {stable_mosaic.version = 11 : i64} {
  func.func @res_tail_proj_kernel(%arg0: i32, %arg1: memref<128x72xbf16, #tpu.memory_space<vmem>>, %arg2: memref<72x128xbf16, #tpu.memory_space<vmem>>, %arg3: memref<1x128xf32, #tpu.memory_space<vmem>>, %arg4: memref<1x128xf32, #tpu.memory_space<vmem>>, %arg5: memref<128x4xbf16, #tpu.memory_space<vmem>>, %arg6: memref<4x128xbf16, #tpu.memory_space<vmem>>, %arg7: memref<1x128xf32, #tpu.memory_space<vmem>>, %arg8: memref<1x128xf32, #tpu.memory_space<vmem>>, %arg9: memref<128x128xf32, #tpu.memory_space<vmem>>) attributes {dimension_semantics = [#tpu.dimension_semantics<parallel>], iteration_bounds = array<i64: 1>, scalar_prefetch = 0 : i64, scratch_operands = 0 : i64, tpu.core_type = #tpu.core_type<tc>, window_params = [{transform_indices = @transform_0, window_bounds = array<i64: 128, 72>}, {pipeline_mode = #tpu.pipeline_mode<synchronous>, transform_indices = @transform_1, window_bounds = array<i64: 72, 128>}, {pipeline_mode = #tpu.pipeline_mode<synchronous>, transform_indices = @transform_2, window_bounds = array<i64: 1, 128>}, {pipeline_mode = #tpu.pipeline_mode<synchronous>, transform_indices = @transform_3, window_bounds = array<i64: 1, 128>}, {transform_indices = @transform_4, window_bounds = array<i64: 128, 4>}, {pipeline_mode = #tpu.pipeline_mode<synchronous>, transform_indices = @transform_5, window_bounds = array<i64: 4, 128>}, {pipeline_mode = #tpu.pipeline_mode<synchronous>, transform_indices = @transform_6, window_bounds = array<i64: 1, 128>}, {pipeline_mode = #tpu.pipeline_mode<synchronous>, transform_indices = @transform_7, window_bounds = array<i64: 1, 128>}, {transform_indices = @transform_8, window_bounds = array<i64: 128, 128>}]} {
    %c0 = arith.constant 0 : index
    %c0_0 = arith.constant 0 : index
    %0 = vector.load %arg1[%c0, %c0_0] : memref<128x72xbf16, #tpu.memory_space<vmem>>, vector<128x72xbf16>
    %c0_1 = arith.constant 0 : index
    %c0_2 = arith.constant 0 : index
    %1 = vector.load %arg2[%c0_1, %c0_2] : memref<72x128xbf16, #tpu.memory_space<vmem>>, vector<72x128xbf16>
    %cst = arith.constant dense<0.000000e+00> : vector<128x128xf32>
    %2 = tpu.matmul %0, %1, %cst {dimension_numbers = #tpu.dot_dimension_numbers<[1], [0], [0], [1], [0, 0, 1, 1], [], []>} : vector<128x72xbf16>, vector<72x128xbf16>, vector<128x128xf32> -> vector<128x128xf32>
    %c0_3 = arith.constant 0 : index
    %c0_4 = arith.constant 0 : index
    %3 = vector.load %arg3[%c0_3, %c0_4] : memref<1x128xf32, #tpu.memory_space<vmem>>, vector<1x128xf32>
    %4 = vector.broadcast %3 : vector<1x128xf32> to vector<128x128xf32>
    %5 = arith.mulf %2, %4 : vector<128x128xf32>
    %c0_5 = arith.constant 0 : index
    %c0_6 = arith.constant 0 : index
    %6 = vector.load %arg4[%c0_5, %c0_6] : memref<1x128xf32, #tpu.memory_space<vmem>>, vector<1x128xf32>
    %7 = vector.broadcast %6 : vector<1x128xf32> to vector<128x128xf32>
    %8 = arith.addf %5, %7 : vector<128x128xf32>
    %c0_7 = arith.constant 0 : index
    %c0_8 = arith.constant 0 : index
    %9 = vector.load %arg5[%c0_7, %c0_8] : memref<128x4xbf16, #tpu.memory_space<vmem>>, vector<128x4xbf16>
    %c0_9 = arith.constant 0 : index
    %c0_10 = arith.constant 0 : index
    %10 = vector.load %arg6[%c0_9, %c0_10] : memref<4x128xbf16, #tpu.memory_space<vmem>>, vector<4x128xbf16>
    %cst_11 = arith.constant dense<0.000000e+00> : vector<128x128xf32>
    %11 = tpu.matmul %9, %10, %cst_11 {dimension_numbers = #tpu.dot_dimension_numbers<[1], [0], [0], [1], [0, 0, 1, 1], [], []>} : vector<128x4xbf16>, vector<4x128xbf16>, vector<128x128xf32> -> vector<128x128xf32>
    %c0_12 = arith.constant 0 : index
    %c0_13 = arith.constant 0 : index
    %12 = vector.load %arg7[%c0_12, %c0_13] : memref<1x128xf32, #tpu.memory_space<vmem>>, vector<1x128xf32>
    %13 = vector.broadcast %12 : vector<1x128xf32> to vector<128x128xf32>
    %14 = arith.mulf %11, %13 : vector<128x128xf32>
    %c0_14 = arith.constant 0 : index
    %c0_15 = arith.constant 0 : index
    %15 = vector.load %arg8[%c0_14, %c0_15] : memref<1x128xf32, #tpu.memory_space<vmem>>, vector<1x128xf32>
    %16 = vector.broadcast %15 : vector<1x128xf32> to vector<128x128xf32>
    %17 = arith.addf %14, %16 : vector<128x128xf32>
    %18 = arith.addf %8, %17 : vector<128x128xf32>
    %cst_16 = arith.constant 0.000000e+00 : f32
    %19 = vector.broadcast %cst_16 : f32 to vector<128x128xf32>
    %20 = arith.maximumf %18, %19 : vector<128x128xf32>
    %c0_17 = arith.constant 0 : index
    %c0_18 = arith.constant 0 : index
    %21 = vector.load %arg9[%c0_17, %c0_18] : memref<128x128xf32, #tpu.memory_space<vmem>>, vector<128x128xf32>
    tpu.vector_store %arg9[%c0_17, %c0_18], %20 {strides = array<i32>} : memref<128x128xf32, #tpu.memory_space<vmem>>, vector<128x128xf32>,
    return
  }
  func.func @transform_0(%arg0: i32) -> (i32, i32) {
    %c0_i32 = arith.constant 0 : i32
    %c0_i32_0 = arith.constant 0 : i32
    return %arg0, %c0_i32 : i32, i32
  }
  func.func @transform_1(%arg0: i32) -> (i32, i32) {
    %c0_i32 = arith.constant 0 : i32
    %c0_i32_0 = arith.constant 0 : i32
    %c0_i32_1 = arith.constant 0 : i32
    return %c0_i32, %c0_i32_0 : i32, i32
  }
  func.func @transform_2(%arg0: i32) -> (i32, i32) {
    %c0_i32 = arith.constant 0 : i32
    %c0_i32_0 = arith.constant 0 : i32
    %c0_i32_1 = arith.constant 0 : i32
    return %c0_i32, %c0_i32_0 : i32, i32
  }
  func.func @transform_3(%arg0: i32) -> (i32, i32) {
    %c0_i32 = arith.constant 0 : i32
    %c0_i32_0 = arith.constant 0 : i32
    %c0_i32_1 = arith.constant 0 : i32
    return %c0_i32, %c0_i32_0 : i32, i32
  }
  func.func @transform_4(%arg0: i32) -> (i32, i32) {
    %c0_i32 = arith.constant 0 : i32
    %c0_i32_0 = arith.constant 0 : i32
    return %arg0, %c0_i32 : i32, i32
  }
  func.func @transform_5(%arg0: i32) -> (i32, i32) {
    %c0_i32 = arith.constant 0 : i32
    %c0_i32_0 = arith.constant 0 : i32
    %c0_i32_1 = arith.constant 0 : i32
    return %c0_i32, %c0_i32_0 : i32, i32
  }
  func.func @transform_6(%arg0: i32) -> (i32, i32) {
    %c0_i32 = arith.constant 0 : i32
    %c0_i32_0 = arith.constant 0 : i32
    %c0_i32_1 = arith.constant 0 : i32
    return %c0_i32, %c0_i32_0 : i32, i32
  }
  func.func @transform_7(%arg0: i32) -> (i32, i32) {
    %c0_i32 = arith.constant 0 : i32
    %c0_i32_0 = arith.constant 0 : i32
    %c0_i32_1 = arith.constant 0 : i32
    return %c0_i32, %c0_i32_0 : i32, i32
  }
  func.func @transform_8(%arg0: i32) -> (i32, i32) {
    %c0_i32 = arith.constant 0 : i32
    %c0_i32_0 = arith.constant 0 : i32
    return %arg0, %c0_i32 : i32, i32
  }
}

</mosaic_0001>

<llo_original>
// kernel: resblock_forward.2
$region0: #{resblock_forward.2}
  #allocation0 [shape = 'u32[]', space=smem, size = 0x4, offset = 0x4, fixed_abs, tag = 'smem constant byte address 0x4 - core index']
  #allocation1 [shape = 'u32[72,128]{1,0:T(1,128)}', space=vmem, size = 0x9000, scoped, tag = 'internal scratch']
  %s0 = inlined_call_operand.vmem [shape: bf16[128,36], index: 0, kind: input, shape index: {}]
  %s1 = inlined_call_operand.vmem [shape: bf16[36,128], index: 1, kind: input, shape index: {}]
  %s2 = inlined_call_operand.vmem [shape: f32[1,128], index: 2, kind: input, shape index: {}]
  %s3 = inlined_call_operand.vmem [shape: f32[1,128], index: 3, kind: input, shape index: {}]
  %s4 = inlined_call_operand.vmem [shape: bf16[128,128], index: 4, kind: output, shape index: {}]
  %s5 = sld [smem:[#allocation0]]
  $region26: #{resblock_forward.2} parent=0
    _
  %s7 = ssub.s32 1, %s5
  %s8 = scalar_select 0, %s7, %s5
  // Predicated region
  $region2: #{resblock_forward.2} parent=0 // pred_check
    _
  $region3: #{resblock_forward.2} parent=0 // pred_check_branch
    %10 = sbr.rel (0) target = $region5
  $region4: #{resblock_forward.2} parent=0 // pred_region
    _
  $region5: #{resblock_forward.2} parent=0 // pred_fallthru
    _
  // Predicated region
  $region6: #{resblock_forward.2} parent=0 // pred_check
    _
  $region7: #{resblock_forward.2} parent=0 // pred_check_branch
    %12 = sbr.rel (0) target = $region9
  $region8: #{resblock_forward.2} parent=0 // pred_region
    _
  $region9: #{resblock_forward.2} parent=0 // pred_fallthru
    _
  // Predicated region
  $region10: #{resblock_forward.2} parent=0 // pred_check
    _
  $region11: #{resblock_forward.2} parent=0 // pred_check_branch
    %14 = sbr.rel (0) target = $region13
  $region12: #{resblock_forward.2} parent=0 // pred_region
    _
  $region13: #{resblock_forward.2} parent=0 // pred_fallthru
    _
  // Predicated region
  $region14: #{resblock_forward.2} parent=0 // pred_check
    _
  $region15: #{resblock_forward.2} parent=0 // pred_check_branch
    %16 = sbr.rel (0) target = $region17
  $region16: #{resblock_forward.2} parent=0 // pred_region
    _
  $region17: #{resblock_forward.2} parent=0 // pred_fallthru
    _
  %v18 = vld [vmem:[%s0] sm:$0xf]
  %v19 = vld [vmem:[%s0 + $0x4] sm:$0xf]
  %v20 = vld [vmem:[%s0 + $0x8] sm:$0xf]
  %v21 = vld [vmem:[%s0 + $0xc] sm:$0xf]
  %v22 = vld [vmem:[%s0 + $0x10] sm:$0xf]
  %v23 = vld [vmem:[%s0 + $0x14] sm:$0xf]
  %v24 = vld [vmem:[%s0 + $0x18] sm:$0xf]
  %v25 = vld [vmem:[%s0 + $0x1c] sm:$0xf]
  %v26 = vld [vmem:[%s0 + $0x20] sm:$0xf]
  %v27 = vld [vmem:[%s0 + $0x24] sm:$0xf]
  %v28 = vld [vmem:[%s0 + $0x28] sm:$0xf]
  %v29 = vld [vmem:[%s0 + $0x2c] sm:$0xf]
  %v30 = vld [vmem:[%s0 + $0x30] sm:$0xf]
  %v31 = vld [vmem:[%s0 + $0x34] sm:$0xf]
  %v32 = vld [vmem:[%s0 + $0x38] sm:$0xf]
  %v33 = vld [vmem:[%s0 + $0x3c] sm:$0xf]
  %v34 = vld [vmem:[%s1] sm:$0xf]
  %v35 = vld [vmem:[%s1 + $0x4] sm:$0xf]
  %v36 = vld [vmem:[%s1 + $0x8] sm:$0xf]
  %v37 = vld [vmem:[%s1 + $0xc] sm:$0xf]
  %v38 = vld [vmem:[%s1 + $0x10] sm:$0x3]
  %v55 = vunpack.c.l.b16 %v18
  %v56 = vunpack.c.l.b16 %v19
  %v57 = vunpack.c.l.b16 %v20
  %v58 = vunpack.c.l.b16 %v21
  %v59 = vunpack.c.l.b16 %v22
  %v60 = vunpack.c.l.b16 %v23
  %v61 = vunpack.c.l.b16 %v24
  %v62 = vunpack.c.l.b16 %v25
  %v63 = vunpack.c.l.b16 %v26
  %v64 = vunpack.c.l.b16 %v27
  %v65 = vunpack.c.l.b16 %v28
  %v66 = vunpack.c.l.b16 %v29
  %v67 = vunpack.c.l.b16 %v30
  %v68 = vunpack.c.l.b16 %v31
  %v69 = vunpack.c.l.b16 %v32
  %v70 = vunpack.c.l.b16 %v33
  %v71 = vpack.c.b16 %v56, %v55
  %v72 = vpack.c.b16 %v58, %v57
  %v73 = vpack.c.b16 %v60, %v59
  %v74 = vpack.c.b16 %v62, %v61
  %v75 = vpack.c.b16 %v64, %v63
  %v76 = vpack.c.b16 %v66, %v65
  %v77 = vpack.c.b16 %v68, %v67
  %v78 = vpack.c.b16 %v70, %v69
  %v84 = vunpack.c.l.b16 %v34
  %v85 = vunpack.c.l.b16 %v35
  %v86 = vunpack.c.l.b16 %v36
  %v87 = vunpack.c.l.b16 %v37
  %v88 = vunpack.c.l.b16 %v38
  %v89 = vpack.c.b16 %v85, %v84
  %v90 = vpack.c.b16 %v87, %v86
  %v91 = vpack.c.b16 %v88, %v88
  %vm94 = vcmask 293888
  %v96 = vsel %vm94, %v71, 0
  %v99 = vsel %vm94, %v72, 0
  %v102 = vsel %vm94, %v73, 0
  %v105 = vsel %vm94, %v74, 0
  %v108 = vsel %vm94, %v75, 0
  %v111 = vsel %vm94, %v76, 0
  %v114 = vsel %vm94, %v77, 0
  %v117 = vsel %vm94, %v78, 0
  %vm119 = vcmask 1041408
  %v121 = vsel %vm119, %v91, 0
  %123 = vmatpush.bf16.msra.mxu0 0
  %124 = vmatpush.bf16.msra.mxu0 0
  %125 = vmatpush.bf16.msra.mxu0 0
  %126 = vmatpush.bf16.msra.mxu0 0
  %127 = vmatpush.bf16.msra.mxu0 0
  %128 = vmatpush.bf16.msra.mxu0 %v121
  %129 = vmatpush.bf16.msra.mxu0 %v90
  %130 = vmatpush.bf16.msra.mxu0 %v89
  %131 = vmatmul.bf16.gmra.mxu0 %v96
  %v132 = vpop.f32.mrf.mxu0
  %v133 = vadd.f32 0.0, %v132
  %v134 = vpop.f32.mrf.mxu0
  %v135 = vadd.f32 0.0, %v134
  %136 = vmatmul.bf16.gmra.mxu0 %v99
  %v137 = vpop.f32.mrf.mxu0
  %v138 = vadd.f32 0.0, %v137
  %v139 = vpop.f32.mrf.mxu0
  %v140 = vadd.f32 0.0, %v139
  %141 = vmatmul.bf16.gmra.mxu0 %v102
  %v142 = vpop.f32.mrf.mxu0
  %v143 = vadd.f32 0.0, %v142
  %v144 = vpop.f32.mrf.mxu0
  %v145 = vadd.f32 0.0, %v144
  %146 = vmatmul.bf16.gmra.mxu0 %v105
  %v147 = vpop.f32.mrf.mxu0
  %v148 = vadd.f32 0.0, %v147
  %v149 = vpop.f32.mrf.mxu0
  %v150 = vadd.f32 0.0, %v149
  %151 = vmatmul.bf16.gmra.mxu0 %v108
  %v152 = vpop.f32.mrf.mxu0
  %v153 = vadd.f32 0.0, %v152
  %v154 = vpop.f32.mrf.mxu0
  %v155 = vadd.f32 0.0, %v154
  %156 = vmatmul.bf16.gmra.mxu0 %v111
  %v157 = vpop.f32.mrf.mxu0
  %v158 = vadd.f32 0.0, %v157
  %v159 = vpop.f32.mrf.mxu0
  %v160 = vadd.f32 0.0, %v159
  %161 = vmatmul.bf16.gmra.mxu0 %v114
  %v162 = vpop.f32.mrf.mxu0
  %v163 = vadd.f32 0.0, %v162
  %v164 = vpop.f32.mrf.mxu0
  %v165 = vadd.f32 0.0, %v164
  %166 = vmatmul.bf16.gmra.mxu0 %v117
  %v167 = vpop.f32.mrf.mxu0
  %v168 = vadd.f32 0.0, %v167
  %v169 = vpop.f32.mrf.mxu0
  %v170 = vadd.f32 0.0, %v169
  %171 = vdwg.mxu0
  %v172 = vld [vmem:[%s2] sm:$0x1]
  %v174 = vperm.slane %v172, 0
  %v176 = vmul.f32 %v133, %v174
  %v177 = vmul.f32 %v135, %v174
  %v178 = vmul.f32 %v138, %v174
  %v179 = vmul.f32 %v140, %v174
  %v180 = vmul.f32 %v143, %v174
  %v181 = vmul.f32 %v145, %v174
  %v182 = vmul.f32 %v148, %v174
  %v183 = vmul.f32 %v150, %v174
  %v184 = vmul.f32 %v153, %v174
  %v185 = vmul.f32 %v155, %v174
  %v186 = vmul.f32 %v158, %v174
  %v187 = vmul.f32 %v160, %v174
  %v188 = vmul.f32 %v163, %v174
  %v189 = vmul.f32 %v165, %v174
  %v190 = vmul.f32 %v168, %v174
  %v191 = vmul.f32 %v170, %v174
  %v192 = vld [vmem:[%s3] sm:$0x1]
  %v194 = vperm.slane %v192, 0
  %v196 = vadd.f32 %v176, %v194
  %v197 = vadd.f32 %v177, %v194
  %v198 = vadd.f32 %v178, %v194
  %v199 = vadd.f32 %v179, %v194
  %v200 = vadd.f32 %v180, %v194
  %v201 = vadd.f32 %v181, %v194
  %v202 = vadd.f32 %v182, %v194
  %v203 = vadd.f32 %v183, %v194
  %v204 = vadd.f32 %v184, %v194
  %v205 = vadd.f32 %v185, %v194
  %v206 = vadd.f32 %v186, %v194
  %v207 = vadd.f32 %v187, %v194
  %v208 = vadd.f32 %v188, %v194
  %v209 = vadd.f32 %v189, %v194
  %v210 = vadd.f32 %v190, %v194
  %v211 = vadd.f32 %v191, %v194
  %v212 = vmax.f32 %v196, 0.0
  %v213 = vmax.f32 %v197, 0.0
  %v214 = vmax.f32 %v198, 0.0
  %v215 = vmax.f32 %v199, 0.0
  %v216 = vmax.f32 %v200, 0.0
  %v217 = vmax.f32 %v201, 0.0
  %v218 = vmax.f32 %v202, 0.0
  %v219 = vmax.f32 %v203, 0.0
  %v220 = vmax.f32 %v204, 0.0
  %v221 = vmax.f32 %v205, 0.0
  %v222 = vmax.f32 %v206, 0.0
  %v223 = vmax.f32 %v207, 0.0
  %v224 = vmax.f32 %v208, 0.0
  %v225 = vmax.f32 %v209, 0.0
  %v226 = vmax.f32 %v210, 0.0
  %v227 = vmax.f32 %v211, 0.0
  %v228 = vpack.c.bf16 %v212, %v212
  %v229 = vpack.c.bf16 %v213, %v213
  %v230 = vpack.c.bf16 %v214, %v214
  %v231 = vpack.c.bf16 %v215, %v215
  %v232 = vpack.c.bf16 %v216, %v216
  %v233 = vpack.c.bf16 %v217, %v217
  %v234 = vpack.c.bf16 %v218, %v218
  %v235 = vpack.c.bf16 %v219, %v219
  %v236 = vpack.c.bf16 %v220, %v220
  %v237 = vpack.c.bf16 %v221, %v221
  %v238 = vpack.c.bf16 %v222, %v222
  %v239 = vpack.c.bf16 %v223, %v223
  %v240 = vpack.c.bf16 %v224, %v224
  %v241 = vpack.c.bf16 %v225, %v225
  %v242 = vpack.c.bf16 %v226, %v226
  %v243 = vpack.c.bf16 %v227, %v227
  %244 = vst [vmem:[%s4] sm:$0xf] %v228
  %245 = vst [vmem:[%s4 + $0x4] sm:$0xf] %v229
  %246 = vst [vmem:[%s4 + $0x8] sm:$0xf] %v230
  %247 = vst [vmem:[%s4 + $0xc] sm:$0xf] %v231
  %248 = vst [vmem:[%s4 + $0x10] sm:$0xf] %v232
  %249 = vst [vmem:[%s4 + $0x14] sm:$0xf] %v233
  %250 = vst [vmem:[%s4 + $0x18] sm:$0xf] %v234
  %251 = vst [vmem:[%s4 + $0x1c] sm:$0xf] %v235
  %252 = vst [vmem:[%s4 + $0x20] sm:$0xf] %v236
  %253 = vst [vmem:[%s4 + $0x24] sm:$0xf] %v237
  %254 = vst [vmem:[%s4 + $0x28] sm:$0xf] %v238
  %255 = vst [vmem:[%s4 + $0x2c] sm:$0xf] %v239
  %256 = vst [vmem:[%s4 + $0x30] sm:$0xf] %v240
  %257 = vst [vmem:[%s4 + $0x34] sm:$0xf] %v241
  %258 = vst [vmem:[%s4 + $0x38] sm:$0xf] %v242
  %259 = vst [vmem:[%s4 + $0x3c] sm:$0xf] %v243
  // Predicated region
  $region18: #{resblock_forward.2} parent=0 // pred_check
    _
  $region19: #{resblock_forward.2} parent=0 // pred_check_branch
    %261 = sbr.rel (0) target = $region21
  $region20: #{resblock_forward.2} parent=0 // pred_region
    _
  $region21: #{resblock_forward.2} parent=0 // pred_fallthru
    _
  // Predicated region
  $region22: #{resblock_forward.2} parent=0 // pred_check
    _
  $region23: #{resblock_forward.2} parent=0 // pred_check_branch
    %263 = sbr.rel (0) target = $region25
  $region24: #{resblock_forward.2} parent=0 // pred_region
    _
  $region25: #{resblock_forward.2} parent=0 // pred_fallthru
    _

// kernel: resblock_forward.3
$region0: #{resblock_forward.3}
  #allocation0 [shape = 'u32[]', space=smem, size = 0x4, offset = 0x4, fixed_abs, tag = 'smem constant byte address 0x4 - core index']
  #allocation1 [shape = 'u32[72,128]{1,0:T(1,128)}', space=vmem, size = 0x9000, scoped, tag = 'internal scratch']
  %s0 = inlined_call_operand.vmem [shape: bf16[128,72], index: 0, kind: input, shape index: {}]
  %s1 = inlined_call_operand.vmem [shape: bf16[72,128], index: 1, kind: input, shape index: {}]
  %s2 = inlined_call_operand.vmem [shape: f32[1,128], index: 2, kind: input, shape index: {}]
  %s3 = inlined_call_operand.vmem [shape: f32[1,128], index: 3, kind: input, shape index: {}]
  %s4 = inlined_call_operand.vmem [shape: bf16[128,4], index: 4, kind: input, shape index: {}]
  %s5 = inlined_call_operand.vmem [shape: bf16[4,128], index: 5, kind: input, shape index: {}]
  %s6 = inlined_call_operand.vmem [shape: f32[1,128], index: 6, kind: input, shape index: {}]
  %s7 = inlined_call_operand.vmem [shape: f32[1,128], index: 7, kind: input, shape index: {}]
  %s8 = inlined_call_operand.vmem [shape: f32[128,128], index: 8, kind: output, shape index: {}]
  %s9 = sld [smem:[#allocation0]]
  $region42: #{resblock_forward.3} parent=0
    _
  %s11 = ssub.s32 1, %s9
  %s12 = scalar_select 0, %s11, %s9
  // Predicated region
  $region2: #{resblock_forward.3} parent=0 // pred_check
    _
  $region3: #{resblock_forward.3} parent=0 // pred_check_branch
    %14 = sbr.rel (0) target = $region5
  $region4: #{resblock_forward.3} parent=0 // pred_region
    _
  $region5: #{resblock_forward.3} parent=0 // pred_fallthru
    _
  // Predicated region
  $region6: #{resblock_forward.3} parent=0 // pred_check
    _
  $region7: #{resblock_forward.3} parent=0 // pred_check_branch
    %16 = sbr.rel (0) target = $region9
  $region8: #{resblock_forward.3} parent=0 // pred_region
    _
  $region9: #{resblock_forward.3} parent=0 // pred_fallthru
    _
  // Predicated region
  $region10: #{resblock_forward.3} parent=0 // pred_check
    _
  $region11: #{resblock_forward.3} parent=0 // pred_check_branch
    %18 = sbr.rel (0) target = $region13
  $region12: #{resblock_forward.3} parent=0 // pred_region
    _
  $region13: #{resblock_forward.3} parent=0 // pred_fallthru
    _
  // Predicated region
  $region14: #{resblock_forward.3} parent=0 // pred_check
    _
  $region15: #{resblock_forward.3} parent=0 // pred_check_branch
    %20 = sbr.rel (0) target = $region17
  $region16: #{resblock_forward.3} parent=0 // pred_region
    _
  $region17: #{resblock_forward.3} parent=0 // pred_fallthru
    _
  // Predicated region
  $region18: #{resblock_forward.3} parent=0 // pred_check
    _
  $region19: #{resblock_forward.3} parent=0 // pred_check_branch
    %22 = sbr.rel (0) target = $region21
  $region20: #{resblock_forward.3} parent=0 // pred_region
    _
  $region21: #{resblock_forward.3} parent=0 // pred_fallthru
    _
  // Predicated region
  $region22: #{resblock_forward.3} parent=0 // pred_check
    _
  $region23: #{resblock_forward.3} parent=0 // pred_check_branch
    %24 = sbr.rel (0) target = $region25
  $region24: #{resblock_forward.3} parent=0 // pred_region
    _
  $region25: #{resblock_forward.3} parent=0 // pred_fallthru
    _
  // Predicated region
  $region26: #{resblock_forward.3} parent=0 // pred_check
    _
  $region27: #{resblock_forward.3} parent=0 // pred_check_branch
    %26 = sbr.rel (0) target = $region29
  $region28: #{resblock_forward.3} parent=0 // pred_region
    _
  $region29: #{resblock_forward.3} parent=0 // pred_fallthru
    _
  // Predicated region
  $region30: #{resblock_forward.3} parent=0 // pred_check
    _
  $region31: #{resblock_forward.3} parent=0 // pred_check_branch
    %28 = sbr.rel (0) target = $region33
  $region32: #{resblock_forward.3} parent=0 // pred_region
    _
  $region33: #{resblock_forward.3} parent=0 // pred_fallthru
    _
  %v30 = vld [vmem:[%s0] sm:$0xf]
  %v31 = vld [vmem:[%s0 + $0x4] sm:$0xf]
  %v32 = vld [vmem:[%s0 + $0x8] sm:$0xf]
  %v33 = vld [vmem:[%s0 + $0xc] sm:$0xf]
  %v34 = vld [vmem:[%s0 + $0x10] sm:$0xf]
  %v35 = vld [vmem:[%s0 + $0x14] sm:$0xf]
  %v36 = vld [vmem:[%s0 + $0x18] sm:$0xf]
  %v37 = vld [vmem:[%s0 + $0x1c] sm:$0xf]
  %v38 = vld [vmem:[%s0 + $0x20] sm:$0xf]
  %v39 = vld [vmem:[%s0 + $0x24] sm:$0xf]
  %v40 = vld [vmem:[%s0 + $0x28] sm:$0xf]
  %v41 = vld [vmem:[%s0 + $0x2c] sm:$0xf]
  %v42 = vld [vmem:[%s0 + $0x30] sm:$0xf]
  %v43 = vld [vmem:[%s0 + $0x34] sm:$0xf]
  %v44 = vld [vmem:[%s0 + $0x38] sm:$0xf]
  %v45 = vld [vmem:[%s0 + $0x3c] sm:$0xf]
  %v46 = vld [vmem:[%s1] sm:$0xf]
  %v47 = vld [vmem:[%s1 + $0x4] sm:$0xf]
  %v48 = vld [vmem:[%s1 + $0x8] sm:$0xf]
  %v49 = vld [vmem:[%s1 + $0xc] sm:$0xf]
  %v50 = vld [vmem:[%s1 + $0x10] sm:$0xf]
  %v51 = vld [vmem:[%s1 + $0x14] sm:$0xf]
  %v52 = vld [vmem:[%s1 + $0x18] sm:$0xf]
  %v53 = vld [vmem:[%s1 + $0x1c] sm:$0xf]
  %v54 = vld [vmem:[%s1 + $0x20] sm:$0xf]
  %v71 = vunpack.c.l.b16 %v30
  %v72 = vunpack.c.l.b16 %v31
  %v73 = vunpack.c.l.b16 %v32
  %v74 = vunpack.c.l.b16 %v33
  %v75 = vunpack.c.l.b16 %v34
  %v76 = vunpack.c.l.b16 %v35
  %v77 = vunpack.c.l.b16 %v36
  %v78 = vunpack.c.l.b16 %v37
  %v79 = vunpack.c.l.b16 %v38
  %v80 = vunpack.c.l.b16 %v39
  %v81 = vunpack.c.l.b16 %v40
  %v82 = vunpack.c.l.b16 %v41
  %v83 = vunpack.c.l.b16 %v42
  %v84 = vunpack.c.l.b16 %v43
  %v85 = vunpack.c.l.b16 %v44
  %v86 = vunpack.c.l.b16 %v45
  %v87 = vpack.c.b16 %v72, %v71
  %v88 = vpack.c.b16 %v74, %v73
  %v89 = vpack.c.b16 %v76, %v75
  %v90 = vpack.c.b16 %v78, %v77
  %v91 = vpack.c.b16 %v80, %v79
  %v92 = vpack.c.b16 %v82, %v81
  %v93 = vpack.c.b16 %v84, %v83
  %v94 = vpack.c.b16 %v86, %v85
  %v104 = vunpack.c.l.b16 %v46
  %v105 = vunpack.c.l.b16 %v47
  %v106 = vunpack.c.l.b16 %v48
  %v107 = vunpack.c.l.b16 %v49
  %v108 = vunpack.c.l.b16 %v50
  %v109 = vunpack.c.l.b16 %v51
  %v110 = vunpack.c.l.b16 %v52
  %v111 = vunpack.c.l.b16 %v53
  %v112 = vunpack.c.l.b16 %v54
  %v113 = vpack.c.b16 %v105, %v104
  %v114 = vpack.c.b16 %v107, %v106
  %v115 = vpack.c.b16 %v109, %v108
  %v116 = vpack.c.b16 %v111, %v110
  %v117 = vpack.c.b16 %v112, %v112
  %vm122 = vcmask 588800
  %v124 = vsel %vm122, %v87, 0
  %v127 = vsel %vm122, %v88, 0
  %v130 = vsel %vm122, %v89, 0
  %v133 = vsel %vm122, %v90, 0
  %v136 = vsel %vm122, %v91, 0
  %v139 = vsel %vm122, %v92, 0
  %v142 = vsel %vm122, %v93, 0
  %v145 = vsel %vm122, %v94, 0
  %vm147 = vcmask 1043456
  %v149 = vsel %vm147, %v117, 0
  %151 = vmatpush.bf16.msra.mxu0 0
  %152 = vmatpush.bf16.msra.mxu0 0
  %153 = vmatpush.bf16.msra.mxu0 0
  %154 = vmatpush.bf16.msra.mxu0 %v149
  %155 = vmatpush.bf16.msra.mxu0 %v116
  %156 = vmatpush.bf16.msra.mxu0 %v115
  %157 = vmatpush.bf16.msra.mxu0 %v114
  %158 = vmatpush.bf16.msra.mxu0 %v113
  %159 = vmatmul.bf16.gmra.mxu0 %v124
  %v160 = vpop.f32.mrf.mxu0
  %v161 = vadd.f32 0.0, %v160
  %v162 = vpop.f32.mrf.mxu0
  %v163 = vadd.f32 0.0, %v162
  %164 = vmatmul.bf16.gmra.mxu0 %v127
  %v165 = vpop.f32.mrf.mxu0
  %v166 = vadd.f32 0.0, %v165
  %v167 = vpop.f32.mrf.mxu0
  %v168 = vadd.f32 0.0, %v167
  %169 = vmatmul.bf16.gmra.mxu0 %v130
  %v170 = vpop.f32.mrf.mxu0
  %v171 = vadd.f32 0.0, %v170
  %v172 = vpop.f32.mrf.mxu0
  %v173 = vadd.f32 0.0, %v172
  %174 = vmatmul.bf16.gmra.mxu0 %v133
  %v175 = vpop.f32.mrf.mxu0
  %v176 = vadd.f32 0.0, %v175
  %v177 = vpop.f32.mrf.mxu0
  %v178 = vadd.f32 0.0, %v177
  %179 = vmatmul.bf16.gmra.mxu0 %v136
  %v180 = vpop.f32.mrf.mxu0
  %v181 = vadd.f32 0.0, %v180
  %v182 = vpop.f32.mrf.mxu0
  %v183 = vadd.f32 0.0, %v182
  %184 = vmatmul.bf16.gmra.mxu0 %v139
  %v185 = vpop.f32.mrf.mxu0
  %v186 = vadd.f32 0.0, %v185
  %v187 = vpop.f32.mrf.mxu0
  %v188 = vadd.f32 0.0, %v187
  %189 = vmatmul.bf16.gmra.mxu0 %v142
  %v190 = vpop.f32.mrf.mxu0
  %v191 = vadd.f32 0.0, %v190
  %v192 = vpop.f32.mrf.mxu0
  %v193 = vadd.f32 0.0, %v192
  %194 = vmatmul.bf16.gmra.mxu0 %v145
  %v195 = vpop.f32.mrf.mxu0
  %v196 = vadd.f32 0.0, %v195
  %v197 = vpop.f32.mrf.mxu0
  %v198 = vadd.f32 0.0, %v197
  %199 = vdwg.mxu0
  %v200 = vld [vmem:[%s2] sm:$0x1]
  %v202 = vperm.slane %v200, 0
  %v204 = vmul.f32 %v161, %v202
  %v205 = vmul.f32 %v163, %v202
  %v206 = vmul.f32 %v166, %v202
  %v207 = vmul.f32 %v168, %v202
  %v208 = vmul.f32 %v171, %v202
  %v209 = vmul.f32 %v173, %v202
  %v210 = vmul.f32 %v176, %v202
  %v211 = vmul.f32 %v178, %v202
  %v212 = vmul.f32 %v181, %v202
  %v213 = vmul.f32 %v183, %v202
  %v214 = vmul.f32 %v186, %v202
  %v215 = vmul.f32 %v188, %v202
  %v216 = vmul.f32 %v191, %v202
  %v217 = vmul.f32 %v193, %v202
  %v218 = vmul.f32 %v196, %v202
  %v219 = vmul.f32 %v198, %v202
  %v220 = vld [vmem:[%s3] sm:$0x1]
  %v222 = vperm.slane %v220, 0
  %v224 = vadd.f32 %v204, %v222
  %v225 = vadd.f32 %v205, %v222
  %v226 = vadd.f32 %v206, %v222
  %v227 = vadd.f32 %v207, %v222
  %v228 = vadd.f32 %v208, %v222
  %v229 = vadd.f32 %v209, %v222
  %v230 = vadd.f32 %v210, %v222
  %v231 = vadd.f32 %v211, %v222
  %v232 = vadd.f32 %v212, %v222
  %v233 = vadd.f32 %v213, %v222
  %v234 = vadd.f32 %v214, %v222
  %v235 = vadd.f32 %v215, %v222
  %v236 = vadd.f32 %v216, %v222
  %v237 = vadd.f32 %v217, %v222
  %v238 = vadd.f32 %v218, %v222
  %v239 = vadd.f32 %v219, %v222
  %v240 = vld [vmem:[%s4] sm:$0xf]
  %v241 = vld [vmem:[%s4 + $0x4] sm:$0xf]
  %v242 = vld [vmem:[%s4 + $0x8] sm:$0xf]
  %v243 = vld [vmem:[%s4 + $0xc] sm:$0xf]
  %v244 = vld [vmem:[%s4 + $0x10] sm:$0xf]
  %v245 = vld [vmem:[%s4 + $0x14] sm:$0xf]
  %v246 = vld [vmem:[%s4 + $0x18] sm:$0xf]
  %v247 = vld [vmem:[%s4 + $0x1c] sm:$0xf]
  %v248 = vld [vmem:[%s4 + $0x20] sm:$0xf]
  %v249 = vld [vmem:[%s4 + $0x24] sm:$0xf]
  %v250 = vld [vmem:[%s4 + $0x28] sm:$0xf]
  %v251 = vld [vmem:[%s4 + $0x2c] sm:$0xf]
  %v252 = vld [vmem:[%s4 + $0x30] sm:$0xf]
  %v253 = vld [vmem:[%s4 + $0x34] sm:$0xf]
  %v254 = vld [vmem:[%s4 + $0x38] sm:$0xf]
  %v255 = vld [vmem:[%s4 + $0x3c] sm:$0xf]
  %v256 = vld [vmem:[%s5] sm:$0x3]
  %v273 = vunpack.c.l.b16 %v240
  %v274 = vunpack.c.l.b16 %v241
  %v275 = vunpack.c.l.b16 %v242
  %v276 = vunpack.c.l.b16 %v243
  %v277 = vunpack.c.l.b16 %v244
  %v278 = vunpack.c.l.b16 %v245
  %v279 = vunpack.c.l.b16 %v246
  %v280 = vunpack.c.l.b16 %v247
  %v281 = vunpack.c.l.b16 %v248
  %v282 = vunpack.c.l.b16 %v249
  %v283 = vunpack.c.l.b16 %v250
  %v284 = vunpack.c.l.b16 %v251
  %v285 = vunpack.c.l.b16 %v252
  %v286 = vunpack.c.l.b16 %v253
  %v287 = vunpack.c.l.b16 %v254
  %v288 = vunpack.c.l.b16 %v255
  %v289 = vpack.c.b16 %v274, %v273
  %v290 = vpack.c.b16 %v276, %v275
  %v291 = vpack.c.b16 %v278, %v277
  %v292 = vpack.c.b16 %v280, %v279
  %v293 = vpack.c.b16 %v282, %v281
  %v294 = vpack.c.b16 %v284, %v283
  %v295 = vpack.c.b16 %v286, %v285
  %v296 = vpack.c.b16 %v288, %v287
  %vm297 = vcmask 31744
  %v299 = vsel %vm297, %v289, 0
  %v302 = vsel %vm297, %v290, 0
  %v305 = vsel %vm297, %v291, 0
  %v308 = vsel %vm297, %v292, 0
  %v311 = vsel %vm297, %v293, 0
  %v314 = vsel %vm297, %v294, 0
  %v317 = vsel %vm297, %v295, 0
  %v320 = vsel %vm297, %v296, 0
  %vm322 = vcmask 1041408
  %v324 = vsel %vm322, %v256, 0
  %326 = vmatpush.bf16.msra.mxu0 0
  %327 = vmatpush.bf16.msra.mxu0 0
  %328 = vmatpush.bf16.msra.mxu0 0
  %329 = vmatpush.bf16.msra.mxu0 0
  %330 = vmatpush.bf16.msra.mxu0 0
  %331 = vmatpush.bf16.msra.mxu0 0
  %332 = vmatpush.bf16.msra.mxu0 0
  %333 = vmatpush.bf16.msra.mxu0 %v324
  %334 = vmatmul.bf16.gmra.mxu0 %v299
  %v335 = vpop.f32.mrf.mxu0
  %v336 = vadd.f32 0.0, %v335
  %v337 = vpop.f32.mrf.mxu0
  %v338 = vadd.f32 0.0, %v337
  %339 = vmatmul.bf16.gmra.mxu0 %v302
  %v340 = vpop.f32.mrf.mxu0
  %v341 = vadd.f32 0.0, %v340
  %v342 = vpop.f32.mrf.mxu0
  %v343 = vadd.f32 0.0, %v342
  %344 = vmatmul.bf16.gmra.mxu0 %v305
  %v345 = vpop.f32.mrf.mxu0
  %v346 = vadd.f32 0.0, %v345
  %v347 = vpop.f32.mrf.mxu0
  %v348 = vadd.f32 0.0, %v347
  %349 = vmatmul.bf16.gmra.mxu0 %v308
  %v350 = vpop.f32.mrf.mxu0
  %v351 = vadd.f32 0.0, %v350
  %v352 = vpop.f32.mrf.mxu0
  %v353 = vadd.f32 0.0, %v352
  %354 = vmatmul.bf16.gmra.mxu0 %v311
  %v355 = vpop.f32.mrf.mxu0
  %v356 = vadd.f32 0.0, %v355
  %v357 = vpop.f32.mrf.mxu0
  %v358 = vadd.f32 0.0, %v357
  %359 = vmatmul.bf16.gmra.mxu0 %v314
  %v360 = vpop.f32.mrf.mxu0
  %v361 = vadd.f32 0.0, %v360
  %v362 = vpop.f32.mrf.mxu0
  %v363 = vadd.f32 0.0, %v362
  %364 = vmatmul.bf16.gmra.mxu0 %v317
  %v365 = vpop.f32.mrf.mxu0
  %v366 = vadd.f32 0.0, %v365
  %v367 = vpop.f32.mrf.mxu0
  %v368 = vadd.f32 0.0, %v367
  %369 = vmatmul.bf16.gmra.mxu0 %v320
  %v370 = vpop.f32.mrf.mxu0
  %v371 = vadd.f32 0.0, %v370
  %v372 = vpop.f32.mrf.mxu0
  %v373 = vadd.f32 0.0, %v372
  %374 = vdwg.mxu0
  %v375 = vld [vmem:[%s6] sm:$0x1]
  %v377 = vperm.slane %v375, 0
  %v379 = vmul.f32 %v336, %v377
  %v380 = vmul.f32 %v338, %v377
  %v381 = vmul.f32 %v341, %v377
  %v382 = vmul.f32 %v343, %v377
  %v383 = vmul.f32 %v346, %v377
  %v384 = vmul.f32 %v348, %v377
  %v385 = vmul.f32 %v351, %v377
  %v386 = vmul.f32 %v353, %v377
  %v387 = vmul.f32 %v356, %v377
  %v388 = vmul.f32 %v358, %v377
  %v389 = vmul.f32 %v361, %v377
  %v390 = vmul.f32 %v363, %v377
  %v391 = vmul.f32 %v366, %v377
  %v392 = vmul.f32 %v368, %v377
  %v393 = vmul.f32 %v371, %v377
  %v394 = vmul.f32 %v373, %v377
  %v395 = vld [vmem:[%s7] sm:$0x1]
  %v397 = vperm.slane %v395, 0
  %v399 = vadd.f32 %v379, %v397
  %v400 = vadd.f32 %v380, %v397
  %v401 = vadd.f32 %v381, %v397
  %v402 = vadd.f32 %v382, %v397
  %v403 = vadd.f32 %v383, %v397
  %v404 = vadd.f32 %v384, %v397
  %v405 = vadd.f32 %v385, %v397
  %v406 = vadd.f32 %v386, %v397
  %v407 = vadd.f32 %v387, %v397
  %v408 = vadd.f32 %v388, %v397
  %v409 = vadd.f32 %v389, %v397
  %v410 = vadd.f32 %v390, %v397
  %v411 = vadd.f32 %v391, %v397
  %v412 = vadd.f32 %v392, %v397
  %v413 = vadd.f32 %v393, %v397
  %v414 = vadd.f32 %v394, %v397
  %v415 = vadd.f32 %v224, %v399
  %v416 = vadd.f32 %v225, %v400
  %v417 = vadd.f32 %v226, %v401
  %v418 = vadd.f32 %v227, %v402
  %v419 = vadd.f32 %v228, %v403
  %v420 = vadd.f32 %v229, %v404
  %v421 = vadd.f32 %v230, %v405
  %v422 = vadd.f32 %v231, %v406
  %v423 = vadd.f32 %v232, %v407
  %v424 = vadd.f32 %v233, %v408
  %v425 = vadd.f32 %v234, %v409
  %v426 = vadd.f32 %v235, %v410
  %v427 = vadd.f32 %v236, %v411
  %v428 = vadd.f32 %v237, %v412
  %v429 = vadd.f32 %v238, %v413
  %v430 = vadd.f32 %v239, %v414
  %v431 = vmax.f32 %v415, 0.0
  %v432 = vmax.f32 %v416, 0.0
  %v433 = vmax.f32 %v417, 0.0
  %v434 = vmax.f32 %v418, 0.0
  %v435 = vmax.f32 %v419, 0.0
  %v436 = vmax.f32 %v420, 0.0
  %v437 = vmax.f32 %v421, 0.0
  %v438 = vmax.f32 %v422, 0.0
  %v439 = vmax.f32 %v423, 0.0
  %v440 = vmax.f32 %v424, 0.0
  %v441 = vmax.f32 %v425, 0.0
  %v442 = vmax.f32 %v426, 0.0
  %v443 = vmax.f32 %v427, 0.0
  %v444 = vmax.f32 %v428, 0.0
  %v445 = vmax.f32 %v429, 0.0
  %v446 = vmax.f32 %v430, 0.0
  %447 = vst [vmem:[%s8] sm:$0xff] %v431
  %448 = vst [vmem:[%s8 + $0x8] sm:$0xff] %v432
  %449 = vst [vmem:[%s8 + $0x10] sm:$0xff] %v433
  %450 = vst [vmem:[%s8 + $0x18] sm:$0xff] %v434
  %451 = vst [vmem:[%s8 + $0x20] sm:$0xff] %v435
  %452 = vst [vmem:[%s8 + $0x28] sm:$0xff] %v436
  %453 = vst [vmem:[%s8 + $0x30] sm:$0xff] %v437
  %454 = vst [vmem:[%s8 + $0x38] sm:$0xff] %v438
  %455 = vst [vmem:[%s8 + $0x40] sm:$0xff] %v439
  %456 = vst [vmem:[%s8 + $0x48] sm:$0xff] %v440
  %457 = vst [vmem:[%s8 + $0x50] sm:$0xff] %v441
  %458 = vst [vmem:[%s8 + $0x58] sm:$0xff] %v442
  %459 = vst [vmem:[%s8 + $0x60] sm:$0xff] %v443
  %460 = vst [vmem:[%s8 + $0x68] sm:$0xff] %v444
  %461 = vst [vmem:[%s8 + $0x70] sm:$0xff] %v445
  %462 = vst [vmem:[%s8 + $0x78] sm:$0xff] %v446
  // Predicated region
  $region34: #{resblock_forward.3} parent=0 // pred_check
    _
  $region35: #{resblock_forward.3} parent=0 // pred_check_branch
    %464 = sbr.rel (0) target = $region37
  $region36: #{resblock_forward.3} parent=0 // pred_region
    _
  $region37: #{resblock_forward.3} parent=0 // pred_fallthru
    _
  // Predicated region
  $region38: #{resblock_forward.3} parent=0 // pred_check
    _
  $region39: #{resblock_forward.3} parent=0 // pred_check_branch
    %466 = sbr.rel (0) target = $region41
  $region40: #{resblock_forward.3} parent=0 // pred_region
    _
  $region41: #{resblock_forward.3} parent=0 // pred_fallthru
    _

</llo_original>
